<compile_context>
chip_gen: v7x
topology: tpu7x:2x2x1
jax: 0.10.0
libtpu: 0.0.40
codegen_flags: <defaults>
</compile_context>

<pallas_src>
import functools

import jax
import jax.numpy as jnp
from jax import lax
from jax.experimental import pallas as pl
from jax.experimental.pallas import tpu as pltpu

_LN_EPS = 1e-5  # PyTorch nn.LayerNorm default


# --------------------------------------------------------------------------- #
# Fused kernel
# --------------------------------------------------------------------------- #
def _ln_f32(x, gamma, beta):
    """Row-wise LayerNorm (biased variance) in f32; gamma/beta are (1, D)."""
    mean = jnp.mean(x, axis=-1, keepdims=True)
    cent = x - mean
    var = jnp.mean(cent * cent, axis=-1, keepdims=True)
    return cent * lax.rsqrt(var + _LN_EPS) * gamma + beta


def _mlp_fused_kernel(*refs, use_feature_norm, use_relu, layer_N, compute_dtype):
    """One row-tile of the full MLPBase forward.

    Ref layout (inputs, then output):
      x_ref (tm, Din)
      [fn_ref (2, Din)]                    if use_feature_norm
      fc1_w (Din, H), fc1_p (3, H)         p rows = [bias, ln_gamma, ln_beta]
      for each of layer_N: w (H, H), p (3, H)
      o_ref (tm, H)
    """
    idx = 0
    x_ref = refs[idx]; idx += 1
    fn_ref = None
    if use_feature_norm:
        fn_ref = refs[idx]; idx += 1
    fc1_w_ref = refs[idx]; idx += 1
    fc1_p_ref = refs[idx]; idx += 1
    fc2_refs = []
    for _ in range(layer_N):
        fc2_refs.append((refs[idx], refs[idx + 1]))
        idx += 2
    o_ref = refs[idx]

    act = (lambda h: jnp.maximum(h, 0.0)) if use_relu else jnp.tanh

    x = x_ref[...].astype(jnp.float32)
    if use_feature_norm:
        fn = fn_ref[...].astype(jnp.float32)            # (2, Din)
        x = _ln_f32(x, fn[0:1, :], fn[1:2, :])

    def block(x_f32, w_ref, p_ref):
        p = p_ref[...].astype(jnp.float32)              # (3, Dout)
        h = jnp.dot(x_f32.astype(compute_dtype),
                    w_ref[...].astype(compute_dtype),
                    preferred_element_type=jnp.float32)
        h = h + p[0:1, :]                               # bias
        a = act(h)
        return _ln_f32(a, p[1:2, :], p[2:3, :])

    x = block(x, fc1_w_ref, fc1_p_ref)
    for w_ref, p_ref in fc2_refs:                       # static unroll over layers
        x = block(x, w_ref, p_ref)

    o_ref[...] = x.astype(o_ref.dtype)


# --------------------------------------------------------------------------- #
# Wrapper
# --------------------------------------------------------------------------- #
def _round_up(n, m):
    return ((n + m - 1) // m) * m


def _choose_row_tile(N, Din, H, layer_N, cbytes):
    """Largest sublane-aligned row tile (<=1024) that keeps VMEM usage modest."""
    budget = 20 * 1024 * 1024  # conservative: fits default scoped VMEM everywhere
    # resident weights/params (double-buffer worst case) + per-row tile cost
    resident = 2 * cbytes * (Din * H + layer_N * H * H) \
        + 2 * 4 * (2 * Din + 3 * H * (layer_N + 1))
    tm = 1024
    while tm > 8:
        per_row = 2 * cbytes * Din + 2 * 4 * H + 4 * (Din + 4 * H)  # tiles + slack
        if resident + tm * per_row <= budget:
            break
        tm //= 2
    return max(8, min(tm, _round_up(N, 8)))


def mlp_base_forward(x, params, *, use_feature_normalization, use_relu, layer_N,
                     compute_dtype=jnp.float32):
    """Full MLPBase.forward as one fused Pallas kernel.

    params:
      feature_norm: {g, b}                               (only if use_feature_normalization)
      fc1:          {w (Din,H), b, ln_g, ln_b}           (w transposed vs nn.Linear)
      fc2:          list of layer_N dicts like fc1 with (H,H) weights
    """
    N, Din = x.shape
    H = params["fc1"]["w"].shape[1]
    out_dtype = x.dtype
    cdt = jnp.dtype(compute_dtype)
    tm = _choose_row_tile(N, Din, H, layer_N, cdt.itemsize)
    grid = (pl.cdiv(N, tm),)

    args = [x.astype(cdt)]
    in_specs = [pl.BlockSpec((tm, Din), lambda i: (i, 0))]

    def resident_spec(shape):
        nd = len(shape)
        return pl.BlockSpec(shape, lambda i, _nd=nd: (0,) * _nd)

    if use_feature_normalization:
        fn = params["feature_norm"]
        fn_slab = jnp.stack([fn["g"], fn["b"]]).astype(jnp.float32)          # (2, Din)
        args.append(fn_slab)
        in_specs.append(resident_spec((2, Din)))

    def add_layer(p):
        w = p["w"].astype(cdt)
        slab = jnp.stack([p["b"], p["ln_g"], p["ln_b"]]).astype(jnp.float32)  # (3, Dout)
        args.extend([w, slab])
        in_specs.extend([resident_spec(w.shape), resident_spec(slab.shape)])

    add_layer(params["fc1"])
    for i in range(layer_N):
        add_layer(params["fc2"][i])

    kernel = functools.partial(
        _mlp_fused_kernel,
        use_feature_norm=use_feature_normalization,
        use_relu=use_relu,
        layer_N=layer_N,
        compute_dtype=cdt)

    return pl.pallas_call(
        kernel,
        out_shape=jax.ShapeDtypeStruct((N, H), out_dtype),
        grid=grid,
        in_specs=in_specs,
        out_specs=pl.BlockSpec((tm, H), lambda i: (i, 0)),
        compiler_params=pltpu.CompilerParams(
            dimension_semantics=("parallel",),
            vmem_limit_bytes=48 * 1024 * 1024),
    )(*args)


# --------------------------------------------------------------------------- #
# Pure-JAX reference (mirrors the PyTorch forward)
# --------------------------------------------------------------------------- #
def _ref_layernorm(x, g, b):
    m = x.mean(-1, keepdims=True)
    v = ((x - m) ** 2).mean(-1, keepdims=True)
    return (x - m) / jnp.sqrt(v + _LN_EPS) * g + b


def _ref_block(x, p, use_relu):
    h = x @ p["w"] + p["b"]
    a = jnp.maximum(h, 0.0) if use_relu else jnp.tanh(h)
    return _ref_layernorm(a, p["ln_g"], p["ln_b"])


def _ref_forward(x, params, *, use_feature_normalization, use_relu, layer_N):
    if use_feature_normalization:
        fn = params["feature_norm"]
        x = _ref_layernorm(x, fn["g"], fn["b"])
    x = _ref_block(x, params["fc1"], use_relu)
    for i in range(layer_N):
        x = _ref_block(x, params["fc2"][i], use_relu)
    return x


# --------------------------------------------------------------------------- #
# Test
# --------------------------------------------------------------------------- #
def _make_params(key, obs_dim, hidden, layer_N):
    keys = jax.random.split(key, 8)
    params = {
        "feature_norm": {
            "g": 1.0 + 0.1 * jax.random.normal(keys[0], (obs_dim,), jnp.float32),
            "b": 0.1 * jax.random.normal(keys[1], (obs_dim,), jnp.float32),
        },
        "fc1": {
            "w": 0.2 * jax.random.normal(keys[2], (obs_dim, hidden), jnp.float32),
            "b": jnp.zeros((hidden,), jnp.float32),
            "ln_g": 1.0 + 0.1 * jax.random.normal(keys[3], (hidden,), jnp.float32),
            "ln_b": 0.1 * jax.random.normal(keys[4], (hidden,), jnp.float32),
        },
    }
    hk = jax.random.split(keys[5], 3)
    # get_clones() deep-copies fc_h, so every fc2[i] starts from identical values.
    hidden_layer = {
        "w": 0.2 * jax.random.normal(hk[0], (hidden, hidden), jnp.float32),
        "b": jnp.zeros((hidden,), jnp.float32),
        "ln_g": 1.0 + 0.1 * jax.random.normal(hk[1], (hidden,), jnp.float32),
        "ln_b": 0.1 * jax.random.normal(hk[2], (hidden,), jnp.float32),
    }
    params["fc2"] = [dict(hidden_layer) for _ in range(layer_N)]
    return params


if __name__ == "__main__":
    key = jax.random.PRNGKey(0)
    obs_dim, hidden = 20, 32

    # --- Test 1: ReLU + feature norm, f32 matmul, batch divisible by 8 --------
    layer_N = 1
    params = _make_params(jax.random.fold_in(key, 1), obs_dim, hidden, layer_N)
    x = jax.random.normal(jax.random.fold_in(key, 2), (8, obs_dim), jnp.float32)
    out = jax.block_until_ready(mlp_base_forward(
        x, params, use_feature_normalization=True, use_relu=True, layer_N=layer_N))
    ref = _ref_forward(x, params, use_feature_normalization=True,
                       use_relu=True, layer_N=layer_N)
    assert out.shape == (8, hidden), f"bad output shape {out.shape}"
    assert jnp.allclose(out, ref, atol=2e-3, rtol=2e-3), "f32 relu mismatch"

    # --- Test 2: Tanh, no feature norm, ragged batch (no pad/slice path) ------
    layer_N2 = 2
    params2 = _make_params(jax.random.fold_in(key, 3), obs_dim, hidden, layer_N2)
    x2 = jax.random.normal(jax.random.fold_in(key, 4), (13, obs_dim), jnp.float32)
    out2 = jax.block_until_ready(mlp_base_forward(
        x2, params2, use_feature_normalization=False, use_relu=False, layer_N=layer_N2))
    ref2 = _ref_forward(x2, params2, use_feature_normalization=False,
                        use_relu=False, layer_N=layer_N2)
    assert out2.shape == (13, hidden), f"bad output shape {out2.shape}"
    assert jnp.allclose(out2, ref2, atol=2e-3, rtol=2e-3), "f32 tanh/ragged mismatch"

    # --- Test 3: bf16 MXU inputs (f32 accumulate + f32 LN), loose tolerance ---
    out3 = jax.block_until_ready(mlp_base_forward(
        x, params, use_feature_normalization=True, use_relu=True, layer_N=layer_N,
        compute_dtype=jnp.bfloat16))
    assert out3.dtype == jnp.float32
    assert jnp.allclose(out3, ref, atol=1e-1, rtol=1e-1), "bf16 mismatch"

    print("KERNEL_OK")
</pallas_src>

<mosaic_0001>
module attributes {stable_mosaic.version = 11 : i64} {
  func.func @_mlp_fused_kernel(%arg0: i32, %arg1: memref<8x20xf32, #tpu.memory_space<vmem>>, %arg2: memref<2x20xf32, #tpu.memory_space<vmem>>, %arg3: memref<20x32xf32, #tpu.memory_space<vmem>>, %arg4: memref<3x32xf32, #tpu.memory_space<vmem>>, %arg5: memref<32x32xf32, #tpu.memory_space<vmem>>, %arg6: memref<3x32xf32, #tpu.memory_space<vmem>>, %arg7: memref<8x32xf32, #tpu.memory_space<vmem>>) attributes {dimension_semantics = [#tpu.dimension_semantics<parallel>], iteration_bounds = array<i64: 1>, scalar_prefetch = 0 : i64, scratch_operands = 0 : i64, tpu.core_type = #tpu.core_type<tc>, window_params = [{transform_indices = @transform_0, window_bounds = array<i64: 8, 20>}, {pipeline_mode = #tpu.pipeline_mode<synchronous>, transform_indices = @transform_1, window_bounds = array<i64: 2, 20>}, {pipeline_mode = #tpu.pipeline_mode<synchronous>, transform_indices = @transform_2, window_bounds = array<i64: 20, 32>}, {pipeline_mode = #tpu.pipeline_mode<synchronous>, transform_indices = @transform_3, window_bounds = array<i64: 3, 32>}, {pipeline_mode = #tpu.pipeline_mode<synchronous>, transform_indices = @transform_4, window_bounds = array<i64: 32, 32>}, {pipeline_mode = #tpu.pipeline_mode<synchronous>, transform_indices = @transform_5, window_bounds = array<i64: 3, 32>}, {transform_indices = @transform_6, window_bounds = array<i64: 8, 32>}]} {
    %c0 = arith.constant 0 : index
    %c0_0 = arith.constant 0 : index
    %0 = vector.load %arg1[%c0, %c0_0] : memref<8x20xf32, #tpu.memory_space<vmem>>, vector<8x20xf32>
    %c0_1 = arith.constant 0 : index
    %c0_2 = arith.constant 0 : index
    %1 = vector.load %arg2[%c0_1, %c0_2] : memref<2x20xf32, #tpu.memory_space<vmem>>, vector<2x20xf32>
    %2 = vector.extract_strided_slice %1 {offsets = [0, 0], sizes = [1, 20], strides = [1, 1]} : vector<2x20xf32> to vector<1x20xf32>
    %3 = vector.extract_strided_slice %1 {offsets = [1, 0], sizes = [1, 20], strides = [1, 1]} : vector<2x20xf32> to vector<1x20xf32>
    %cst = arith.constant dense<0.000000e+00> : vector<8xf32>
    %4 = vector.multi_reduction <add>, %0, %cst [1] : vector<8x20xf32> to vector<8xf32>
    %5 = vector.shape_cast %4 : vector<8xf32> to vector<8x1xf32>
    %cst_3 = arith.constant 2.000000e+01 : f32
    %6 = vector.broadcast %cst_3 : f32 to vector<8x1xf32>
    %7 = arith.divf %5, %6 : vector<8x1xf32>
    %8 = vector.broadcast %7 : vector<8x1xf32> to vector<8x20xf32>
    %9 = arith.subf %0, %8 : vector<8x20xf32>
    %10 = arith.mulf %9, %9 : vector<8x20xf32>
    %cst_4 = arith.constant dense<0.000000e+00> : vector<8xf32>
    %11 = vector.multi_reduction <add>, %10, %cst_4 [1] : vector<8x20xf32> to vector<8xf32>
    %12 = vector.shape_cast %11 : vector<8xf32> to vector<8x1xf32>
    %cst_5 = arith.constant 2.000000e+01 : f32
    %13 = vector.broadcast %cst_5 : f32 to vector<8x1xf32>
    %14 = arith.divf %12, %13 : vector<8x1xf32>
    %cst_6 = arith.constant 9.99999974E-6 : f32
    %15 = vector.broadcast %cst_6 : f32 to vector<8x1xf32>
    %16 = arith.addf %14, %15 : vector<8x1xf32>
    %17 = math.rsqrt %16 : vector<8x1xf32>
    %18 = vector.broadcast %17 : vector<8x1xf32> to vector<8x20xf32>
    %19 = arith.mulf %9, %18 : vector<8x20xf32>
    %20 = vector.broadcast %2 : vector<1x20xf32> to vector<8x20xf32>
    %21 = arith.mulf %19, %20 : vector<8x20xf32>
    %22 = vector.broadcast %3 : vector<1x20xf32> to vector<8x20xf32>
    %23 = arith.addf %21, %22 : vector<8x20xf32>
    %c0_7 = arith.constant 0 : index
    %c0_8 = arith.constant 0 : index
    %24 = vector.load %arg4[%c0_7, %c0_8] : memref<3x32xf32, #tpu.memory_space<vmem>>, vector<3x32xf32>
    %c0_9 = arith.constant 0 : index
    %c0_10 = arith.constant 0 : index
    %25 = vector.load %arg3[%c0_9, %c0_10] : memref<20x32xf32, #tpu.memory_space<vmem>>, vector<20x32xf32>
    %cst_11 = arith.constant dense<0.000000e+00> : vector<8x32xf32>
    %26 = tpu.matmul %23, %25, %cst_11 {dimension_numbers = #tpu.dot_dimension_numbers<[1], [0], [0], [1], [0, 0, 1, 1], [], []>} : vector<8x20xf32>, vector<20x32xf32>, vector<8x32xf32> -> vector<8x32xf32>
    %27 = vector.extract_strided_slice %24 {offsets = [0, 0], sizes = [1, 32], strides = [1, 1]} : vector<3x32xf32> to vector<1x32xf32>
    %28 = vector.broadcast %27 : vector<1x32xf32> to vector<8x32xf32>
    %29 = arith.addf %26, %28 : vector<8x32xf32>
    %cst_12 = arith.constant 0.000000e+00 : f32
    %30 = vector.broadcast %cst_12 : f32 to vector<8x32xf32>
    %31 = arith.maximumf %29, %30 : vector<8x32xf32>
    %32 = vector.extract_strided_slice %24 {offsets = [1, 0], sizes = [1, 32], strides = [1, 1]} : vector<3x32xf32> to vector<1x32xf32>
    %33 = vector.extract_strided_slice %24 {offsets = [2, 0], sizes = [1, 32], strides = [1, 1]} : vector<3x32xf32> to vector<1x32xf32>
    %cst_13 = arith.constant dense<0.000000e+00> : vector<8xf32>
    %34 = vector.multi_reduction <add>, %31, %cst_13 [1] : vector<8x32xf32> to vector<8xf32>
    %35 = vector.shape_cast %34 : vector<8xf32> to vector<8x1xf32>
    %cst_14 = arith.constant 3.200000e+01 : f32
    %36 = vector.broadcast %cst_14 : f32 to vector<8x1xf32>
    %37 = arith.divf %35, %36 : vector<8x1xf32>
    %38 = vector.broadcast %37 : vector<8x1xf32> to vector<8x32xf32>
    %39 = arith.subf %31, %38 : vector<8x32xf32>
    %40 = arith.mulf %39, %39 : vector<8x32xf32>
    %cst_15 = arith.constant dense<0.000000e+00> : vector<8xf32>
    %41 = vector.multi_reduction <add>, %40, %cst_15 [1] : vector<8x32xf32> to vector<8xf32>
    %42 = vector.shape_cast %41 : vector<8xf32> to vector<8x1xf32>
    %cst_16 = arith.constant 3.200000e+01 : f32
    %43 = vector.broadcast %cst_16 : f32 to vector<8x1xf32>
    %44 = arith.divf %42, %43 : vector<8x1xf32>
    %cst_17 = arith.constant 9.99999974E-6 : f32
    %45 = vector.broadcast %cst_17 : f32 to vector<8x1xf32>
    %46 = arith.addf %44, %45 : vector<8x1xf32>
    %47 = math.rsqrt %46 : vector<8x1xf32>
    %48 = vector.broadcast %47 : vector<8x1xf32> to vector<8x32xf32>
    %49 = arith.mulf %39, %48 : vector<8x32xf32>
    %50 = vector.broadcast %32 : vector<1x32xf32> to vector<8x32xf32>
    %51 = arith.mulf %49, %50 : vector<8x32xf32>
    %52 = vector.broadcast %33 : vector<1x32xf32> to vector<8x32xf32>
    %53 = arith.addf %51, %52 : vector<8x32xf32>
    %c0_18 = arith.constant 0 : index
    %c0_19 = arith.constant 0 : index
    %54 = vector.load %arg6[%c0_18, %c0_19] : memref<3x32xf32, #tpu.memory_space<vmem>>, vector<3x32xf32>
    %c0_20 = arith.constant 0 : index
    %c0_21 = arith.constant 0 : index
    %55 = vector.load %arg5[%c0_20, %c0_21] : memref<32x32xf32, #tpu.memory_space<vmem>>, vector<32x32xf32>
    %cst_22 = arith.constant dense<0.000000e+00> : vector<8x32xf32>
    %56 = tpu.matmul %53, %55, %cst_22 {dimension_numbers = #tpu.dot_dimension_numbers<[1], [0], [0], [1], [0, 0, 1, 1], [], []>} : vector<8x32xf32>, vector<32x32xf32>, vector<8x32xf32> -> vector<8x32xf32>
    %57 = vector.extract_strided_slice %54 {offsets = [0, 0], sizes = [1, 32], strides = [1, 1]} : vector<3x32xf32> to vector<1x32xf32>
    %58 = vector.broadcast %57 : vector<1x32xf32> to vector<8x32xf32>
    %59 = arith.addf %56, %58 : vector<8x32xf32>
    %cst_23 = arith.constant 0.000000e+00 : f32
    %60 = vector.broadcast %cst_23 : f32 to vector<8x32xf32>
    %61 = arith.maximumf %59, %60 : vector<8x32xf32>
    %62 = vector.extract_strided_slice %54 {offsets = [1, 0], sizes = [1, 32], strides = [1, 1]} : vector<3x32xf32> to vector<1x32xf32>
    %63 = vector.extract_strided_slice %54 {offsets = [2, 0], sizes = [1, 32], strides = [1, 1]} : vector<3x32xf32> to vector<1x32xf32>
    %cst_24 = arith.constant dense<0.000000e+00> : vector<8xf32>
    %64 = vector.multi_reduction <add>, %61, %cst_24 [1] : vector<8x32xf32> to vector<8xf32>
    %65 = vector.shape_cast %64 : vector<8xf32> to vector<8x1xf32>
    %cst_25 = arith.constant 3.200000e+01 : f32
    %66 = vector.broadcast %cst_25 : f32 to vector<8x1xf32>
    %67 = arith.divf %65, %66 : vector<8x1xf32>
    %68 = vector.broadcast %67 : vector<8x1xf32> to vector<8x32xf32>
    %69 = arith.subf %61, %68 : vector<8x32xf32>
    %70 = arith.mulf %69, %69 : vector<8x32xf32>
    %cst_26 = arith.constant dense<0.000000e+00> : vector<8xf32>
    %71 = vector.multi_reduction <add>, %70, %cst_26 [1] : vector<8x32xf32> to vector<8xf32>
    %72 = vector.shape_cast %71 : vector<8xf32> to vector<8x1xf32>
    %cst_27 = arith.constant 3.200000e+01 : f32
    %73 = vector.broadcast %cst_27 : f32 to vector<8x1xf32>
    %74 = arith.divf %72, %73 : vector<8x1xf32>
    %cst_28 = arith.constant 9.99999974E-6 : f32
    %75 = vector.broadcast %cst_28 : f32 to vector<8x1xf32>
    %76 = arith.addf %74, %75 : vector<8x1xf32>
    %77 = math.rsqrt %76 : vector<8x1xf32>
    %78 = vector.broadcast %77 : vector<8x1xf32> to vector<8x32xf32>
    %79 = arith.mulf %69, %78 : vector<8x32xf32>
    %80 = vector.broadcast %62 : vector<1x32xf32> to vector<8x32xf32>
    %81 = arith.mulf %79, %80 : vector<8x32xf32>
    %82 = vector.broadcast %63 : vector<1x32xf32> to vector<8x32xf32>
    %83 = arith.addf %81, %82 : vector<8x32xf32>
    %c0_29 = arith.constant 0 : index
    %c0_30 = arith.constant 0 : index
    %84 = vector.load %arg7[%c0_29, %c0_30] : memref<8x32xf32, #tpu.memory_space<vmem>>, vector<8x32xf32>
    tpu.vector_store %arg7[%c0_29, %c0_30], %83 {strides = array<i32>} : memref<8x32xf32, #tpu.memory_space<vmem>>, vector<8x32xf32>,
    return
  }
  func.func @transform_0(%arg0: i32) -> (i32, i32) {
    %c0_i32 = arith.constant 0 : i32
    %c0_i32_0 = arith.constant 0 : i32
    return %arg0, %c0_i32 : i32, i32
  }
  func.func @transform_1(%arg0: i32) -> (i32, i32) {
    %c0_i32 = arith.constant 0 : i32
    %c0_i32_0 = arith.constant 0 : i32
    %c0_i32_1 = arith.constant 0 : i32
    return %c0_i32, %c0_i32_0 : i32, i32
  }
  func.func @transform_2(%arg0: i32) -> (i32, i32) {
    %c0_i32 = arith.constant 0 : i32
    %c0_i32_0 = arith.constant 0 : i32
    %c0_i32_1 = arith.constant 0 : i32
    return %c0_i32, %c0_i32_0 : i32, i32
  }
  func.func @transform_3(%arg0: i32) -> (i32, i32) {
    %c0_i32 = arith.constant 0 : i32
    %c0_i32_0 = arith.constant 0 : i32
    %c0_i32_1 = arith.constant 0 : i32
    return %c0_i32, %c0_i32_0 : i32, i32
  }
  func.func @transform_4(%arg0: i32) -> (i32, i32) {
    %c0_i32 = arith.constant 0 : i32
    %c0_i32_0 = arith.constant 0 : i32
    %c0_i32_1 = arith.constant 0 : i32
    return %c0_i32, %c0_i32_0 : i32, i32
  }
  func.func @transform_5(%arg0: i32) -> (i32, i32) {
    %c0_i32 = arith.constant 0 : i32
    %c0_i32_0 = arith.constant 0 : i32
    %c0_i32_1 = arith.constant 0 : i32
    return %c0_i32, %c0_i32_0 : i32, i32
  }
  func.func @transform_6(%arg0: i32) -> (i32, i32) {
    %c0_i32 = arith.constant 0 : i32
    %c0_i32_0 = arith.constant 0 : i32
    return %arg0, %c0_i32 : i32, i32
  }
}

</mosaic_0001>

<llo_original>
// kernel: tpu_custom_call.1
$region0: #{tpu_custom_call.1}
  #allocation0 [shape = 'u32[]', space=smem, size = 0x4, offset = 0x4, fixed_abs, tag = 'smem constant byte address 0x4 - core index']
  #allocation1 [shape = 'u32[144,128]{1,0:T(1,128)}', space=vmem, size = 0x12000, scoped, tag = 'internal scratch']
  %s0 = inlined_call_operand.hbm [shape: f32[8,20], index: 0, kind: input, shape index: {}]
  %s1 = inlined_call_operand.vmem [shape: f32[2,20], index: 1, kind: input, shape index: {}]
  %s2 = inlined_call_operand.hbm [shape: f32[20,32], index: 2, kind: input, shape index: {}]
  %s3 = inlined_call_operand.vmem [shape: f32[3,32], index: 3, kind: input, shape index: {}]
  %s4 = inlined_call_operand.hbm [shape: f32[32,32], index: 4, kind: input, shape index: {}]
  %s5 = inlined_call_operand.vmem [shape: f32[3,32], index: 5, kind: input, shape index: {}]
  %s6 = inlined_call_operand.hbm [shape: f32[8,32], index: 6, kind: output, shape index: {}]
  %s7 = sld [smem:[#allocation0]]
  $region46: #{tpu_custom_call.1} parent=0
    _
  %s9 = ssub.s32 1, %s7
  %s10 = scalar_select 0, %s9, %s7
  $region1: #{tpu_custom_call.1} parent=0
    #allocation2 [shape = 'u8[4096]{0}', space=vmem, size = 0x1000, scoped, tag = 'input window, operand 0, single buffered']
    #allocation3 [shape = 's32[1]{0}', space=sflag, size = 0x4, scoped, tag = 'scoped memory for tpu_custom_call.1']
    #allocation4 [shape = 's32[1]{0}', space=sflag, size = 0x4, scoped, tag = 'scoped memory for tpu_custom_call.1']
    #allocation5 [shape = 'u8[12288]{0}', space=vmem, size = 0x3000, scoped, tag = 'input window, operand 2, single buffered']
    #allocation6 [shape = 's32[1]{0}', space=sflag, size = 0x4, scoped, tag = 'scoped memory for tpu_custom_call.1']
    #allocation7 [shape = 'u8[16384]{0}', space=vmem, size = 0x4000, scoped, tag = 'input window, operand 4, single buffered']
    #allocation8 [shape = 'u8[4096]{0}', space=vmem, size = 0x1000, scoped, tag = 'output window, operand 0, single buffered']
    %11 = vsyncpa [#allocation3], 0
    %12 = vsyncpa [#allocation6], 0
    %13 = vsyncpa [#allocation4], 0
    // Predicated region
    $region2: #{tpu_custom_call.1} parent=1 // pred_check
      _
    $region3: #{tpu_custom_call.1} parent=1 // pred_check_branch
      %15 = sbr.rel (0) target = $region5
    $region4: #{tpu_custom_call.1} parent=1 // pred_region
      %s17 = ssub.s32 128, 128
      %18 = vsyncadd [#allocation3], %s17
      %s20 = sshll.u32 [#allocation2], 4
      %s21 = int_to_ptr.vmem [resolvable:$true] %s20
      %23 = dma.hbm_to_vmem [thread:$0]  %s0, 128, %s21, [#allocation3]
    $region5: #{tpu_custom_call.1} parent=1 // pred_fallthru
      _
    // Predicated region
    $region6: #{tpu_custom_call.1} parent=1 // pred_check
      _
    $region7: #{tpu_custom_call.1} parent=1 // pred_check_branch
      %25 = sbr.rel (0) target = $region9
    $region8: #{tpu_custom_call.1} parent=1 // pred_region
      _
    $region9: #{tpu_custom_call.1} parent=1 // pred_fallthru
      _
    // Predicated region
    $region10: #{tpu_custom_call.1} parent=1 // pred_check
      _
    $region11: #{tpu_custom_call.1} parent=1 // pred_check_branch
      %27 = sbr.rel (0) target = $region13
    $region12: #{tpu_custom_call.1} parent=1 // pred_region
      %s29 = ssub.s32 384, 384
      %30 = vsyncadd [#allocation6], %s29
      %s31 = sshll.u32 [#allocation5], 4
      %s32 = int_to_ptr.vmem [resolvable:$true] %s31
      %37 = dma.hbm_to_vmem [thread:$0]  %s2, 384, %s32, [#allocation6], 128, 128, 8
    $region13: #{tpu_custom_call.1} parent=1 // pred_fallthru
      _
    // Predicated region
    $region14: #{tpu_custom_call.1} parent=1 // pred_check
      _
    $region15: #{tpu_custom_call.1} parent=1 // pred_check_branch
      %39 = sbr.rel (0) target = $region17
    $region16: #{tpu_custom_call.1} parent=1 // pred_region
      _
    $region17: #{tpu_custom_call.1} parent=1 // pred_fallthru
      _
    // Predicated region
    $region18: #{tpu_custom_call.1} parent=1 // pred_check
      _
    $region19: #{tpu_custom_call.1} parent=1 // pred_check_branch
      %41 = sbr.rel (0) target = $region21
    $region20: #{tpu_custom_call.1} parent=1 // pred_region
      %s43 = ssub.s32 512, 512
      %44 = vsyncadd [#allocation6], %s43
      %s45 = sshll.u32 [#allocation7], 4
      %s46 = int_to_ptr.vmem [resolvable:$true] %s45
      %51 = dma.hbm_to_vmem [thread:$0]  %s4, 512, %s46, [#allocation6], 128, 128, 8
    $region21: #{tpu_custom_call.1} parent=1 // pred_fallthru
      _
    // Predicated region
    $region22: #{tpu_custom_call.1} parent=1 // pred_check
      _
    $region23: #{tpu_custom_call.1} parent=1 // pred_check_branch
      %53 = sbr.rel (0) target = $region25
    $region24: #{tpu_custom_call.1} parent=1 // pred_region
      _
    $region25: #{tpu_custom_call.1} parent=1 // pred_fallthru
      _
    // Predicated region
    $region26: #{tpu_custom_call.1} parent=1 // pred_check
      _
    $region27: #{tpu_custom_call.1} parent=1 // pred_check_branch
      %55 = sbr.rel (0) target = $region29
    $region28: #{tpu_custom_call.1} parent=1 // pred_region
      %56 = dma.done [#allocation3], 128
    $region29: #{tpu_custom_call.1} parent=1 // pred_fallthru
      _
    // Predicated region
    $region30: #{tpu_custom_call.1} parent=1 // pred_check
      _
    $region31: #{tpu_custom_call.1} parent=1 // pred_check_branch
      %58 = sbr.rel (0) target = $region33
    $region32: #{tpu_custom_call.1} parent=1 // pred_region
      %59 = dma.done [#allocation6], 384
    $region33: #{tpu_custom_call.1} parent=1 // pred_fallthru
      _
    // Predicated region
    $region34: #{tpu_custom_call.1} parent=1 // pred_check
      _
    $region35: #{tpu_custom_call.1} parent=1 // pred_check_branch
      %61 = sbr.rel (0) target = $region37
    $region36: #{tpu_custom_call.1} parent=1 // pred_region
      %62 = dma.done [#allocation6], 512
    $region37: #{tpu_custom_call.1} parent=1 // pred_fallthru
      _
    %v63 = vld [vmem:[#allocation2] sm:$0xff]
    %v64 = vld [vmem:[%s1] sm:$0x3]
    %vm65 = vcmask 162816
    %v66 = vsel %vm65, %v63, 0.0
    %67 = vadd.xlane.f32.xlu0 %v66
    %v68 = vpop.xlane.xlu0 %67
    %v69 = vrcp.pop 20.0
    %v70 = vmul.f32 %v68, %v69
    %v71 = vsub.f32 %v63, %v70
    %v72 = vmul.f32 %v71, %v71
    %v73 = vsel %vm65, %v72, 0.0
    %74 = vadd.xlane.f32.xlu0 %v73
    %v75 = vpop.xlane.xlu0 %74
    %v76 = vmul.f32 %v75, %v69
    %v77 = vadd.f32 %v76, 1e-05
    %v78 = vrsqrt.pop %v77
    %v79 = vmul.f32 %v71, %v78
    %v80 = vlaneseq
    %v81 = vshrl.u32 %v80, 7
    %v82 = vsub.s32 0, %v81
    %v83 = vrot.slane %v64, %v82
    %v84 = vmul.f32 %v79, %v83
    %v85 = vlaneseq
    %v86 = vshrl.u32 %v85, 7
    %v87 = vsub.s32 1, %v86
    %v88 = vrot.slane %v64, %v87
    %v89 = vadd.f32 %v84, %v88
    %v90 = vld [vmem:[%s3] sm:$0x7]
    %v91 = vld [vmem:[#allocation5] sm:$0xff]
    %v92 = vld [vmem:[#allocation5 + $0x8] sm:$0xff]
    %v93 = vld [vmem:[#allocation5 + $0x10] sm:$0xf]
    %v94 = vlaneseq
    %v95 = vshrl.u32 %v94, 7
    %v96 = vsub.s32 0, %v95
    %v97 = vrot.slane %v90, %v96
    %v99 = vsel %vm65, %v89, 0
    %vm101 = vcmask 1043456
    %v103 = vsel %vm101, %v93, 0
    %105 = vmatprep.subr.mxu0 0.0
    %106 = vmatpush1.msra.mxu0 %v91
    %107 = vmatprep.subr.mxu0 0.0
    %108 = vmatpush1.msra.mxu0 %v92
    %109 = vmatprep.subr.mxu0 0.0
    %110 = vmatpush1.msra.mxu0 %v103
    %111 = vmatprep.subr.mxu0 0.0
    %112 = vmatpush1.msra.mxu0 0.0
    %113 = vmatprep.subr.mxu0 0.0
    %114 = vmatpush1.msra.mxu0 0.0
    %115 = vmatprep.subr.mxu0 0.0
    %116 = vmatpush1.msra.mxu0 0.0
    %117 = vmatprep.subr.mxu0 0.0
    %118 = vmatpush1.msra.mxu0 0.0
    %119 = vmatprep.subr.mxu0 0.0
    %120 = vmatpush1.msra.mxu0 0.0
    %121 = vmatprep.subr.mxu0 0.0
    %122 = vmatpush1.msra.mxu0 0.0
    %123 = vmatprep.subr.mxu0 0.0
    %124 = vmatpush1.msra.mxu0 0.0
    %125 = vmatprep.subr.mxu0 0.0
    %126 = vmatpush1.msra.mxu0 0.0
    %127 = vmatprep.subr.mxu0 0.0
    %128 = vmatpush1.msra.mxu0 0.0
    %129 = vmatprep.subr.mxu0 0.0
    %130 = vmatpush1.msra.mxu0 0.0
    %131 = vmatprep.subr.mxu0 0.0
    %132 = vmatpush1.msra.mxu0 0.0
    %133 = vmatprep.subr.mxu0 0.0
    %134 = vmatpush1.msra.mxu0 0.0
    %135 = vmatprep.subr.mxu0 0.0
    %136 = vmatpush1.msra.mxu0 0.0
    %137 = vmatprep.subr.mxu0 0.0
    %138 = vmatpush1.msra.mxu0 0.0
    %139 = vmatprep.subr.mxu0 0.0
    %140 = vmatpush1.msra.mxu0 0.0
    %141 = vmatprep.subr.mxu0 0.0
    %142 = vmatpush1.msra.mxu0 0.0
    %143 = vmatprep.subr.mxu0 0.0
    %144 = vmatpush1.msra.mxu0 0.0
    %145 = vmatprep.subr.mxu0 0.0
    %146 = vmatpush1.msra.mxu0 0.0
    %147 = vmatprep.subr.mxu0 0.0
    %148 = vmatpush1.msra.mxu0 0.0
    %149 = vmatprep.subr.mxu0 0.0
    %150 = vmatpush1.msra.mxu0 0.0
    %151 = vmatprep.subr.mxu0 0.0
    %152 = vmatpush1.msra.mxu0 0.0
    %153 = vmatprep.subr.mxu0 0.0
    %154 = vmatpush1.msra.mxu0 0.0
    %155 = vmatprep.subr.mxu0 0.0
    %156 = vmatpush1.msra.mxu0 0.0
    %157 = vmatprep.subr.mxu0 0.0
    %158 = vmatpush1.msra.mxu0 0.0
    %159 = vmatprep.subr.mxu0 0.0
    %160 = vmatpush1.msra.mxu0 0.0
    %161 = vmatprep.subr.mxu0 0.0
    %162 = vmatpush1.msra.mxu0 0.0
    %163 = vmatprep.subr.mxu0 0.0
    %164 = vmatpush1.msra.mxu0 0.0
    %165 = vmatprep.subr.mxu0 0.0
    %166 = vmatpush1.msra.mxu0 0.0
    %167 = vmatprep.subr.mxu0 0.0
    %168 = vmatpush1.msra.mxu0 0.0
    %169 = vmatprep.mubr.f32.mxu0 0.0
    %170 = vmatmul.mubr.f32.gmra.mrb[0].mxu0 %v99
    %v171 = vpop.f32.mrb[0].mxu0
    %v172 = vadd.f32 %v97, %v171
    %v173 = vpop.f32.mrb[0].mxu0
    %174 = vdwg.mxu0
    %v175 = vmax.f32 %v172, 0.0
    %vm176 = vcmask 261120
    %v177 = vsel %vm176, %v175, 0.0
    %178 = vadd.xlane.f32.xlu0 %v177
    %v179 = vpop.xlane.xlu0 %178
    %v180 = vrcp.pop 32.0
    %v181 = vmul.f32 %v179, %v180
    %v182 = vsub.f32 %v175, %v181
    %v183 = vmul.f32 %v182, %v182
    %v184 = vsel %vm176, %v183, 0.0
    %185 = vadd.xlane.f32.xlu0 %v184
    %v186 = vpop.xlane.xlu0 %185
    %v187 = vmul.f32 %v186, %v180
    %v188 = vadd.f32 %v187, 1e-05
    %v189 = vrsqrt.pop %v188
    %v190 = vmul.f32 %v182, %v189
    %v191 = vlaneseq
    %v192 = vshrl.u32 %v191, 7
    %v193 = vsub.s32 1, %v192
    %v194 = vrot.slane %v90, %v193
    %v195 = vmul.f32 %v190, %v194
    %v196 = vlaneseq
    %v197 = vshrl.u32 %v196, 7
    %v198 = vsub.s32 2, %v197
    %v199 = vrot.slane %v90, %v198
    %v200 = vadd.f32 %v195, %v199
    %v201 = vld [vmem:[%s5] sm:$0x7]
    %v202 = vld [vmem:[#allocation7] sm:$0xff]
    %v203 = vld [vmem:[#allocation7 + $0x8] sm:$0xff]
    %v204 = vld [vmem:[#allocation7 + $0x10] sm:$0xff]
    %v205 = vld [vmem:[#allocation7 + $0x18] sm:$0xff]
    %v206 = vlaneseq
    %v207 = vshrl.u32 %v206, 7
    %v208 = vsub.s32 0, %v207
    %v209 = vrot.slane %v201, %v208
    %v211 = vsel %vm176, %v200, 0
    %213 = vmatprep.subr.mxu0 0.0
    %214 = vmatpush1.msra.mxu0 %v202
    %215 = vmatprep.subr.mxu0 0.0
    %216 = vmatpush1.msra.mxu0 %v203
    %217 = vmatprep.subr.mxu0 0.0
    %218 = vmatpush1.msra.mxu0 %v204
    %219 = vmatprep.subr.mxu0 0.0
    %220 = vmatpush1.msra.mxu0 %v205
    %221 = vmatprep.subr.mxu0 0.0
    %222 = vmatpush1.msra.mxu0 0.0
    %223 = vmatprep.subr.mxu0 0.0
    %224 = vmatpush1.msra.mxu0 0.0
    %225 = vmatprep.subr.mxu0 0.0
    %226 = vmatpush1.msra.mxu0 0.0
    %227 = vmatprep.subr.mxu0 0.0
    %228 = vmatpush1.msra.mxu0 0.0
    %229 = vmatprep.subr.mxu0 0.0
    %230 = vmatpush1.msra.mxu0 0.0
    %231 = vmatprep.subr.mxu0 0.0
    %232 = vmatpush1.msra.mxu0 0.0
    %233 = vmatprep.subr.mxu0 0.0
    %234 = vmatpush1.msra.mxu0 0.0
    %235 = vmatprep.subr.mxu0 0.0
    %236 = vmatpush1.msra.mxu0 0.0
    %237 = vmatprep.subr.mxu0 0.0
    %238 = vmatpush1.msra.mxu0 0.0
    %239 = vmatprep.subr.mxu0 0.0
    %240 = vmatpush1.msra.mxu0 0.0
    %241 = vmatprep.subr.mxu0 0.0
    %242 = vmatpush1.msra.mxu0 0.0
    %243 = vmatprep.subr.mxu0 0.0
    %244 = vmatpush1.msra.mxu0 0.0
    %245 = vmatprep.subr.mxu0 0.0
    %246 = vmatpush1.msra.mxu0 0.0
    %247 = vmatprep.subr.mxu0 0.0
    %248 = vmatpush1.msra.mxu0 0.0
    %249 = vmatprep.subr.mxu0 0.0
    %250 = vmatpush1.msra.mxu0 0.0
    %251 = vmatprep.subr.mxu0 0.0
    %252 = vmatpush1.msra.mxu0 0.0
    %253 = vmatprep.subr.mxu0 0.0
    %254 = vmatpush1.msra.mxu0 0.0
    %255 = vmatprep.subr.mxu0 0.0
    %256 = vmatpush1.msra.mxu0 0.0
    %257 = vmatprep.subr.mxu0 0.0
    %258 = vmatpush1.msra.mxu0 0.0
    %259 = vmatprep.subr.mxu0 0.0
    %260 = vmatpush1.msra.mxu0 0.0
    %261 = vmatprep.subr.mxu0 0.0
    %262 = vmatpush1.msra.mxu0 0.0
    %263 = vmatprep.subr.mxu0 0.0
    %264 = vmatpush1.msra.mxu0 0.0
    %265 = vmatprep.subr.mxu0 0.0
    %266 = vmatpush1.msra.mxu0 0.0
    %267 = vmatprep.subr.mxu0 0.0
    %268 = vmatpush1.msra.mxu0 0.0
    %269 = vmatprep.subr.mxu0 0.0
    %270 = vmatpush1.msra.mxu0 0.0
    %271 = vmatprep.subr.mxu0 0.0
    %272 = vmatpush1.msra.mxu0 0.0
    %273 = vmatprep.subr.mxu0 0.0
    %274 = vmatpush1.msra.mxu0 0.0
    %275 = vmatprep.subr.mxu0 0.0
    %276 = vmatpush1.msra.mxu0 0.0
    %277 = vmatprep.mubr.f32.mxu0 0.0
    %278 = vmatmul.mubr.f32.gmra.mrb[0].mxu0 %v211
    %v279 = vpop.f32.mrb[0].mxu0
    %v280 = vadd.f32 %v209, %v279
    %v281 = vpop.f32.mrb[0].mxu0
    %282 = vdwg.mxu0
    %v283 = vmax.f32 %v280, 0.0
    %v284 = vsel %vm176, %v283, 0.0
    %285 = vadd.xlane.f32.xlu0 %v284
    %v286 = vpop.xlane.xlu0 %285
    %v287 = vmul.f32 %v286, %v180
    %v288 = vsub.f32 %v283, %v287
    %v289 = vmul.f32 %v288, %v288
    %v290 = vsel %vm176, %v289, 0.0
    %291 = vadd.xlane.f32.xlu0 %v290
    %v292 = vpop.xlane.xlu0 %291
    %v293 = vmul.f32 %v292, %v180
    %v294 = vadd.f32 %v293, 1e-05
    %v295 = vrsqrt.pop %v294
    %v296 = vmul.f32 %v288, %v295
    %v297 = vlaneseq
    %v298 = vshrl.u32 %v297, 7
    %v299 = vsub.s32 1, %v298
    %v300 = vrot.slane %v201, %v299
    %v301 = vmul.f32 %v296, %v300
    %v302 = vlaneseq
    %v303 = vshrl.u32 %v302, 7
    %v304 = vsub.s32 2, %v303
    %v305 = vrot.slane %v201, %v304
    %v306 = vadd.f32 %v301, %v305
    %307 = vst.msk [vmem:[#allocation8] sm:$0xff] %vm176, %v306
    // Predicated region
    $region38: #{tpu_custom_call.1} parent=1 // pred_check
      _
    $region39: #{tpu_custom_call.1} parent=1 // pred_check_branch
      %309 = sbr.rel (0) target = $region41
    $region40: #{tpu_custom_call.1} parent=1 // pred_region
      %s311 = ssub.s32 128, 128
      %312 = vsyncadd [#allocation4], %s311
      %s314 = sshll.u32 [#allocation8], 4
      %s315 = int_to_ptr.vmem [resolvable:$true] %s314
      %317 = dma.vmem_to_hbm [thread:$0]  %s315, 128, %s6, [#allocation4]
    $region41: #{tpu_custom_call.1} parent=1 // pred_fallthru
      _
    // Predicated region
    $region42: #{tpu_custom_call.1} parent=1 // pred_check
      _
    $region43: #{tpu_custom_call.1} parent=1 // pred_check_branch
      %319 = sbr.rel (0) target = $region45
    $region44: #{tpu_custom_call.1} parent=1 // pred_region
      %320 = dma.done [#allocation4], 128
    $region45: #{tpu_custom_call.1} parent=1 // pred_fallthru
      _
    %321 = vsyncpa [#allocation3], 1
    %322 = vsyncpa [#allocation6], 1
    %323 = vsyncpa [#allocation4], 1

</llo_original>
